<compile_context>
chip_gen: v7x
topology: tpu7x:2x2x1
jax: 0.10.0
libtpu: 0.0.40
codegen_flags: <defaults>
</compile_context>

<pallas_src>
import functools

import jax
import jax.numpy as jnp
from jax.experimental import pallas as pl
from jax.experimental.pallas import tpu as pltpu

LN_EPS = 1e-5


def _segmerge_kernel(x_ref, w_ref, b_ref, o_ref):
    """Fused LayerNorm(Din) + Linear(Din -> tn) on a (row_tile, Din) row tile."""
    x = x_ref[...].astype(jnp.float32)
    mean = jnp.mean(x, axis=-1, keepdims=True)
    ex2 = jnp.mean(x * x, axis=-1, keepdims=True)
    # Single-pass variance; clamp so cancellation can never feed rsqrt a negative.
    var = jnp.maximum(ex2 - mean * mean, 0.0)
    xn = (x - mean) * jax.lax.rsqrt(var + LN_EPS)
    # NOTE: if a bundle dump ever shows VPU binding (not DMA), restructure as
    #   y = invstd*(x@W') - (mean*invstd)*colsum(W') + b'
    # to move the Din-wide broadcasts onto the Dout-wide result.
    y = jnp.dot(xn, w_ref[...].astype(jnp.float32),
                preferred_element_type=jnp.float32) + b_ref[...]
    o_ref[...] = y.astype(o_ref.dtype)


def _vmem_plan():
    """Per-TC working budget + explicit scoped-VMEM limit, keyed off the chip."""
    try:
        cap = int(pltpu.get_tpu_info().vmem_capacity_bytes)   # 128 MiB v5e/v6e, 64 MiB v7x
    except Exception:
        cap = 64 * 1024 * 1024                                # conservative (v7x per-TC)
    budget = min(24 * 1024 * 1024, cap // 3)
    vmem_limit = min(budget + 8 * 1024 * 1024, max(cap // 2, budget))
    return int(budget), int(vmem_limit)


def _plan_tiles(R, Din, Dout, *, max_row_tile, budget, x_itemsize=4):
    """Pick (row_tile, tn): row tile scaled with Din, weight tiled only if too big."""
    # --- Dout (N) tile: keep the folded weight fully resident unless it is too big ---
    w_budget = budget // 3
    if Din * Dout * 4 <= w_budget:
        tn = Dout
    else:
        tn = max(((w_budget // (Din * 4)) // 128) * 128, 128)
        tn = min(tn, Dout)
    # --- row (M) tile: VMEM accounting incl. in-kernel f32 temporaries ---
    per_row = (2 * Din * x_itemsize      # double-buffered x block
               + 2 * tn * 4              # double-buffered out block
               + 2 * Din * 4             # x-as-f32 + xn temporaries
               + tn * 4)                 # y before the store
    fixed = Din * tn * 4 + tn * 4        # single-buffered weight + bias
    avail = max(budget - fixed, per_row * 8)
    cap = max(((avail // per_row) // 8) * 8, 8)
    # Target a few MiB of x per tile so the ~0.35us per-grid-step overhead is amortized.
    target = max((2 * 1024 * 1024) // (Din * x_itemsize), 8)
    row_tile = min(int(max_row_tile), int(cap), int(target), 2048)
    row_tile = min(row_tile, ((R + 7) // 8) * 8)   # don't over-allocate for tiny inputs
    row_tile = max((row_tile // 8) * 8, 8)
    return row_tile, tn


def seg_merging_pallas(x_rows, gamma, beta, w_t, b, *, max_row_tile=2048,
                       cast_to_bf16=False):
    """x_rows: (R, Din) -> (R, Dout) via fused LayerNorm + Linear (LN affine folded)."""
    R, Din = x_rows.shape
    Dout = w_t.shape[1]

    # Fold LN affine into the linear layer (exact):
    #   (xn*g + be) @ W + b  ==  xn @ (g[:,None]*W) + (be @ W + b)
    w_fold = gamma.astype(jnp.float32)[:, None] * w_t.astype(jnp.float32)
    b_fold = (beta.astype(jnp.float32) @ w_t.astype(jnp.float32)
              + b.astype(jnp.float32)).reshape(1, Dout)

    if cast_to_bf16:
        # Halves the dominant x HBM stream; LN stats / MXU accumulation stay f32.
        x_rows = x_rows.astype(jnp.bfloat16)

    budget, vmem_limit = _vmem_plan()
    row_tile, tn = _plan_tiles(R, Din, Dout, max_row_tile=max_row_tile,
                               budget=budget, x_itemsize=x_rows.dtype.itemsize)

    grid = (pl.cdiv(Dout, tn), pl.cdiv(R, row_tile))   # ragged blocks handled by Pallas

    out = pl.pallas_call(
        _segmerge_kernel,
        out_shape=jax.ShapeDtypeStruct((R, Dout), jnp.float32),
        grid_spec=pltpu.PrefetchScalarGridSpec(
            num_scalar_prefetch=0,
            grid=grid,
            in_specs=[
                pl.BlockSpec((row_tile, Din), lambda n, i: (i, 0)),
                # Grid-invariant (per n) params: single-buffered to save VMEM.
                pl.BlockSpec((Din, tn), lambda n, i: (0, n),
                             pipeline_mode=pl.Buffered(1)),
                pl.BlockSpec((1, tn), lambda n, i: (0, n),
                             pipeline_mode=pl.Buffered(1)),
            ],
            out_specs=pl.BlockSpec((row_tile, tn), lambda n, i: (i, n)),
        ),
        compiler_params=pltpu.CompilerParams(
            dimension_semantics=("parallel", "parallel"),
            vmem_limit_bytes=vmem_limit),
    )(x_rows, w_fold, b_fold)

    return out   # exactly (R, Dout): no row padding, no post-slice


def scale_block_forward(x, params, *, win_size, max_row_tile=2048, cast_to_bf16=False):
    """Forward of scale_block (merge layer only; depth=0).

    x: (B, ts_d, seg_num, d_model) float32
    returns: ((B, ts_d, ceil(seg_num/win), d_model), None)
    """
    B, ts_d, seg_num, d_model = x.shape

    if win_size > 1:
        # --- SegMerging glue: pad tail segments + interleave-concat == reshape ---
        pad_num = seg_num % win_size
        if pad_num != 0:
            pad_num = win_size - pad_num
            x = jnp.concatenate([x, x[:, :, -pad_num:, :]], axis=-2)
        seg_pad = x.shape[2]
        merged = seg_pad // win_size
        Din = win_size * d_model
        # torch.cat([x[:,:,i::w,:] for i in range(w)], -1) is exactly this reshape:
        x_rows = x.reshape(B * ts_d * merged, Din)

        out_rows = seg_merging_pallas(
            x_rows,
            params["ln_gamma"],
            params["ln_beta"],
            params["lin_w_t"],
            params["lin_b"],
            max_row_tile=max_row_tile,
            cast_to_bf16=cast_to_bf16,
        )
        x = out_rows.reshape(B, ts_d, merged, d_model)

    # TODO(synk): TwoStageAttentionLayer encode layers omitted (class not provided).
    return x, None


def init_params(key, d_model, win_size):
    """Deterministic parameter init matching nn.LayerNorm / nn.Linear shapes."""
    Din = win_size * d_model
    k1, k2 = jax.random.split(key)
    bound = 1.0 / jnp.sqrt(Din)
    # nn.Linear(Din, d_model): weight (d_model, Din); we store its transpose.
    w = jax.random.uniform(k1, (d_model, Din), jnp.float32, -bound, bound)
    b = jax.random.uniform(k2, (d_model,), jnp.float32, -bound, bound)
    return {
        "ln_gamma": jnp.ones((Din,), jnp.float32),
        "ln_beta": jnp.zeros((Din,), jnp.float32),
        "lin_w_t": w.T,            # (Din, d_model)
        "lin_b": b,                # (d_model,)
    }


def _ref_forward(x, params, win_size):
    """Pure-JAX reference of SegMerging (unfused LN affine + Linear)."""
    B, ts_d, seg_num, d_model = x.shape
    pad = (win_size - seg_num % win_size) % win_size
    xr = jnp.concatenate([x, x[:, :, -pad:, :]], axis=-2) if pad else x
    xr = xr.reshape(B, ts_d, -1, win_size * d_model)
    mu = xr.mean(-1, keepdims=True)
    var = ((xr - mu) ** 2).mean(-1, keepdims=True)
    xn = (xr - mu) / jnp.sqrt(var + LN_EPS)
    xn = xn * params["ln_gamma"] + params["ln_beta"]
    return xn @ params["lin_w_t"] + params["lin_b"]


if __name__ == "__main__":
    key = jax.random.PRNGKey(0)
    all_ok = True

    test_cases = [
        # (B, ts_d, seg_num, d_model, win_size, max_row_tile)
        (2, 3, 9, 64, 2, 2048),   # odd seg_num -> tail-pad path; single ragged block
        (4, 5, 20, 64, 2, 64),    # multi-step grid + ragged last row block exercised
    ]
    for (B, ts_d, seg_num, d_model, win_size, max_rt) in test_cases:
        key, kx, kp, kg, kb = jax.random.split(key, 5)
        x = jax.random.normal(kx, (B, ts_d, seg_num, d_model), jnp.float32)
        params = init_params(kp, d_model, win_size)
        # Non-trivial LN affine so the gamma/beta -> weight fold is actually tested.
        Din = win_size * d_model
        params["ln_gamma"] = 1.0 + 0.1 * jax.random.normal(kg, (Din,), jnp.float32)
        params["ln_beta"] = 0.05 * jax.random.normal(kb, (Din,), jnp.float32)

        fwd = jax.jit(functools.partial(
            scale_block_forward, win_size=win_size, max_row_tile=max_rt))
        out, attns = fwd(x, params)
        out = jax.block_until_ready(out)

        ref = _ref_forward(x, params, win_size)
        all_ok &= (out.shape == ref.shape)
        all_ok &= bool(jnp.max(jnp.abs(out - ref)) < 1e-4)

    # win_size == 1: merge layer is None -> passthrough (no kernel launched).
    key, kx, kp = jax.random.split(key, 3)
    x1 = jax.random.normal(kx, (2, 3, 8, 32), jnp.float32)
    p1 = init_params(kp, 32, 1)
    out1, _ = jax.jit(functools.partial(scale_block_forward, win_size=1))(x1, p1)
    out1 = jax.block_until_ready(out1)
    all_ok &= bool(jnp.array_equal(out1, x1))

    if all_ok:
        print("KERNEL_OK")
</pallas_src>

<mosaic_0001>
module attributes {stable_mosaic.version = 11 : i64} {
  func.func @_segmerge_kernel(%arg0: i32, %arg1: i32, %arg2: memref<32x128xf32, #tpu.memory_space<vmem>>, %arg3: memref<128x64xf32, #tpu.memory_space<vmem>>, %arg4: memref<1x64xf32, #tpu.memory_space<vmem>>, %arg5: memref<32x64xf32, #tpu.memory_space<vmem>>) attributes {dimension_semantics = [#tpu.dimension_semantics<parallel>, #tpu.dimension_semantics<parallel>], iteration_bounds = array<i64: 1, 1>, scalar_prefetch = 0 : i64, scratch_operands = 0 : i64, tpu.core_type = #tpu.core_type<tc>, window_params = [{transform_indices = @transform_0, window_bounds = array<i64: 32, 128>}, {pipeline_mode = #tpu.pipeline_mode<synchronous>, transform_indices = @transform_1, window_bounds = array<i64: 128, 64>}, {pipeline_mode = #tpu.pipeline_mode<synchronous>, transform_indices = @transform_2, window_bounds = array<i64: 1, 64>}, {transform_indices = @transform_3, window_bounds = array<i64: 32, 64>}]} {
    %c0 = arith.constant 0 : index
    %c0_0 = arith.constant 0 : index
    %0 = vector.load %arg2[%c0, %c0_0] : memref<32x128xf32, #tpu.memory_space<vmem>>, vector<32x128xf32>
    %cst = arith.constant dense<0.000000e+00> : vector<32xf32>
    %1 = vector.multi_reduction <add>, %0, %cst [1] : vector<32x128xf32> to vector<32xf32>
    %2 = vector.shape_cast %1 : vector<32xf32> to vector<32x1xf32>
    %cst_1 = arith.constant 1.280000e+02 : f32
    %3 = vector.broadcast %cst_1 : f32 to vector<32x1xf32>
    %4 = arith.divf %2, %3 : vector<32x1xf32>
    %5 = arith.mulf %0, %0 : vector<32x128xf32>
    %cst_2 = arith.constant dense<0.000000e+00> : vector<32xf32>
    %6 = vector.multi_reduction <add>, %5, %cst_2 [1] : vector<32x128xf32> to vector<32xf32>
    %7 = vector.shape_cast %6 : vector<32xf32> to vector<32x1xf32>
    %cst_3 = arith.constant 1.280000e+02 : f32
    %8 = vector.broadcast %cst_3 : f32 to vector<32x1xf32>
    %9 = arith.divf %7, %8 : vector<32x1xf32>
    %10 = arith.mulf %4, %4 : vector<32x1xf32>
    %11 = arith.subf %9, %10 : vector<32x1xf32>
    %cst_4 = arith.constant 0.000000e+00 : f32
    %12 = vector.broadcast %cst_4 : f32 to vector<32x1xf32>
    %13 = arith.maximumf %11, %12 : vector<32x1xf32>
    %14 = vector.broadcast %4 : vector<32x1xf32> to vector<32x128xf32>
    %15 = arith.subf %0, %14 : vector<32x128xf32>
    %cst_5 = arith.constant 9.99999974E-6 : f32
    %16 = vector.broadcast %cst_5 : f32 to vector<32x1xf32>
    %17 = arith.addf %13, %16 : vector<32x1xf32>
    %18 = math.rsqrt %17 : vector<32x1xf32>
    %19 = vector.broadcast %18 : vector<32x1xf32> to vector<32x128xf32>
    %20 = arith.mulf %15, %19 : vector<32x128xf32>
    %c0_6 = arith.constant 0 : index
    %c0_7 = arith.constant 0 : index
    %21 = vector.load %arg3[%c0_6, %c0_7] : memref<128x64xf32, #tpu.memory_space<vmem>>, vector<128x64xf32>
    %cst_8 = arith.constant dense<0.000000e+00> : vector<32x64xf32>
    %22 = tpu.matmul %20, %21, %cst_8 {dimension_numbers = #tpu.dot_dimension_numbers<[1], [0], [0], [1], [0, 0, 1, 1], [], []>} : vector<32x128xf32>, vector<128x64xf32>, vector<32x64xf32> -> vector<32x64xf32>
    %c0_9 = arith.constant 0 : index
    %c0_10 = arith.constant 0 : index
    %23 = vector.load %arg4[%c0_9, %c0_10] : memref<1x64xf32, #tpu.memory_space<vmem>>, vector<1x64xf32>
    %24 = vector.broadcast %23 : vector<1x64xf32> to vector<32x64xf32>
    %25 = arith.addf %22, %24 : vector<32x64xf32>
    %c0_11 = arith.constant 0 : index
    %c0_12 = arith.constant 0 : index
    %26 = vector.load %arg5[%c0_11, %c0_12] : memref<32x64xf32, #tpu.memory_space<vmem>>, vector<32x64xf32>
    tpu.vector_store %arg5[%c0_11, %c0_12], %25 {strides = array<i32>} : memref<32x64xf32, #tpu.memory_space<vmem>>, vector<32x64xf32>,
    return
  }
  func.func @transform_0(%arg0: i32, %arg1: i32) -> (i32, i32) {
    %c0_i32 = arith.constant 0 : i32
    %c0_i32_0 = arith.constant 0 : i32
    return %arg1, %c0_i32 : i32, i32
  }
  func.func @transform_1(%arg0: i32, %arg1: i32) -> (i32, i32) {
    %c0_i32 = arith.constant 0 : i32
    %c0_i32_0 = arith.constant 0 : i32
    return %c0_i32, %arg0 : i32, i32
  }
  func.func @transform_2(%arg0: i32, %arg1: i32) -> (i32, i32) {
    %c0_i32 = arith.constant 0 : i32
    %c0_i32_0 = arith.constant 0 : i32
    return %c0_i32, %arg0 : i32, i32
  }
  func.func @transform_3(%arg0: i32, %arg1: i32) -> (i32, i32) {
    %c0_i32 = arith.constant 0 : i32
    return %arg1, %arg0 : i32, i32
  }
}

</mosaic_0001>

<llo_original>
// kernel: scale_block_forward.1
$region0: #{scale_block_forward.1}
  #allocation0 [shape = 'u32[]', space=smem, size = 0x4, offset = 0x4, fixed_abs, tag = 'smem constant byte address 0x4 - core index']
  #allocation1 [shape = 'u32[144,128]{1,0:T(1,128)}', space=vmem, size = 0x12000, scoped, tag = 'internal scratch']
  %s0 = inlined_call_operand.vmem [shape: f32[30,128], index: 0, kind: input, shape index: {}]
  %s1 = inlined_call_operand.vmem [shape: f32[128,64], index: 1, kind: input, shape index: {}]
  %s2 = inlined_call_operand.vmem [shape: f32[1,64], index: 2, kind: input, shape index: {}]
  %s3 = inlined_call_operand.vmem [shape: f32[30,64], index: 3, kind: output, shape index: {}]
  %s4 = sld [smem:[#allocation0]]
  $region22: #{scale_block_forward.1} parent=0
    _
  %s6 = ssub.s32 1, %s4
  %s7 = scalar_select 0, %s6, %s4
  // Predicated region
  $region2: #{scale_block_forward.1} parent=0 // pred_check
    _
  $region3: #{scale_block_forward.1} parent=0 // pred_check_branch
    %9 = sbr.rel (0) target = $region5
  $region4: #{scale_block_forward.1} parent=0 // pred_region
    _
  $region5: #{scale_block_forward.1} parent=0 // pred_fallthru
    _
  // Predicated region
  $region6: #{scale_block_forward.1} parent=0 // pred_check
    _
  $region7: #{scale_block_forward.1} parent=0 // pred_check_branch
    %11 = sbr.rel (0) target = $region9
  $region8: #{scale_block_forward.1} parent=0 // pred_region
    _
  $region9: #{scale_block_forward.1} parent=0 // pred_fallthru
    _
  // Predicated region
  $region10: #{scale_block_forward.1} parent=0 // pred_check
    _
  $region11: #{scale_block_forward.1} parent=0 // pred_check_branch
    %13 = sbr.rel (0) target = $region13
  $region12: #{scale_block_forward.1} parent=0 // pred_region
    _
  $region13: #{scale_block_forward.1} parent=0 // pred_fallthru
    _
  %v14 = vld [vmem:[%s0] sm:$0xff]
  %v15 = vld [vmem:[%s0 + $0x8] sm:$0xff]
  %v16 = vld [vmem:[%s0 + $0x10] sm:$0xff]
  %v17 = vld [vmem:[%s0 + $0x18] sm:$0xff]
  %18 = vadd.xlane.f32.xlu0 %v14
  %v19 = vpop.xlane.xlu0 %18
  %20 = vadd.xlane.f32.xlu0 %v15
  %v21 = vpop.xlane.xlu0 %20
  %22 = vadd.xlane.f32.xlu0 %v16
  %v23 = vpop.xlane.xlu0 %22
  %24 = vadd.xlane.f32.xlu0 %v17
  %v25 = vpop.xlane.xlu0 %24
  %v26 = vrcp.pop 128.0
  %v27 = vmul.f32 %v19, %v26
  %v28 = vmul.f32 %v21, %v26
  %v29 = vmul.f32 %v23, %v26
  %v30 = vmul.f32 %v25, %v26
  %v31 = vmul.f32 %v14, %v14
  %v32 = vmul.f32 %v15, %v15
  %v33 = vmul.f32 %v16, %v16
  %v34 = vmul.f32 %v17, %v17
  %35 = vadd.xlane.f32.xlu0 %v31
  %v36 = vpop.xlane.xlu0 %35
  %37 = vadd.xlane.f32.xlu0 %v32
  %v38 = vpop.xlane.xlu0 %37
  %39 = vadd.xlane.f32.xlu0 %v33
  %v40 = vpop.xlane.xlu0 %39
  %41 = vadd.xlane.f32.xlu0 %v34
  %v42 = vpop.xlane.xlu0 %41
  %v43 = vmul.f32 %v36, %v26
  %v44 = vmul.f32 %v38, %v26
  %v45 = vmul.f32 %v40, %v26
  %v46 = vmul.f32 %v42, %v26
  %v47 = vmul.f32 %v27, %v27
  %v48 = vmul.f32 %v28, %v28
  %v49 = vmul.f32 %v29, %v29
  %v50 = vmul.f32 %v30, %v30
  %v51 = vsub.f32 %v43, %v47
  %v52 = vsub.f32 %v44, %v48
  %v53 = vsub.f32 %v45, %v49
  %v54 = vsub.f32 %v46, %v50
  %v55 = vmax.f32 %v51, 0.0
  %v56 = vmax.f32 %v52, 0.0
  %v57 = vmax.f32 %v53, 0.0
  %v58 = vmax.f32 %v54, 0.0
  %v59 = vsub.f32 %v14, %v27
  %v60 = vsub.f32 %v15, %v28
  %v61 = vsub.f32 %v16, %v29
  %v62 = vsub.f32 %v17, %v30
  %v63 = vadd.f32 %v55, 1e-05
  %v64 = vadd.f32 %v56, 1e-05
  %v65 = vadd.f32 %v57, 1e-05
  %v66 = vadd.f32 %v58, 1e-05
  %v67 = vrsqrt.pop %v63
  %v68 = vrsqrt.pop %v64
  %v69 = vrsqrt.pop %v65
  %v70 = vrsqrt.pop %v66
  %v71 = vmul.f32 %v59, %v67
  %v72 = vmul.f32 %v60, %v68
  %v73 = vmul.f32 %v61, %v69
  %v74 = vmul.f32 %v62, %v70
  %v75 = vld [vmem:[%s1] sm:$0xff]
  %v76 = vld [vmem:[%s1 + $0x8] sm:$0xff]
  %v77 = vld [vmem:[%s1 + $0x10] sm:$0xff]
  %v78 = vld [vmem:[%s1 + $0x18] sm:$0xff]
  %v79 = vld [vmem:[%s1 + $0x20] sm:$0xff]
  %v80 = vld [vmem:[%s1 + $0x28] sm:$0xff]
  %v81 = vld [vmem:[%s1 + $0x30] sm:$0xff]
  %v82 = vld [vmem:[%s1 + $0x38] sm:$0xff]
  %v83 = vld [vmem:[%s1 + $0x40] sm:$0xff]
  %v84 = vld [vmem:[%s1 + $0x48] sm:$0xff]
  %v85 = vld [vmem:[%s1 + $0x50] sm:$0xff]
  %v86 = vld [vmem:[%s1 + $0x58] sm:$0xff]
  %v87 = vld [vmem:[%s1 + $0x60] sm:$0xff]
  %v88 = vld [vmem:[%s1 + $0x68] sm:$0xff]
  %v89 = vld [vmem:[%s1 + $0x70] sm:$0xff]
  %v90 = vld [vmem:[%s1 + $0x78] sm:$0xff]
  %v91 = vld [vmem:[%s2] sm:$0x1]
  %v93 = vlaneseq
  %v94 = vshrl.u32 %v93, 7
  %v95 = vsub.s32 0, %v94
  %v96 = vrot.slane %v91, %v95
  %98 = vmatprep.subr.mxu0 0.0
  %99 = vmatpush1.msra.mxu0 %v75
  %100 = vmatprep.subr.mxu0 0.0
  %101 = vmatpush1.msra.mxu0 %v76
  %102 = vmatprep.subr.mxu0 0.0
  %103 = vmatpush1.msra.mxu0 %v77
  %104 = vmatprep.subr.mxu0 0.0
  %105 = vmatpush1.msra.mxu0 %v78
  %106 = vmatprep.subr.mxu0 0.0
  %107 = vmatpush1.msra.mxu0 %v79
  %108 = vmatprep.subr.mxu0 0.0
  %109 = vmatpush1.msra.mxu0 %v80
  %110 = vmatprep.subr.mxu0 0.0
  %111 = vmatpush1.msra.mxu0 %v81
  %112 = vmatprep.subr.mxu0 0.0
  %113 = vmatpush1.msra.mxu0 %v82
  %114 = vmatprep.subr.mxu0 0.0
  %115 = vmatpush1.msra.mxu0 %v83
  %116 = vmatprep.subr.mxu0 0.0
  %117 = vmatpush1.msra.mxu0 %v84
  %118 = vmatprep.subr.mxu0 0.0
  %119 = vmatpush1.msra.mxu0 %v85
  %120 = vmatprep.subr.mxu0 0.0
  %121 = vmatpush1.msra.mxu0 %v86
  %122 = vmatprep.subr.mxu0 0.0
  %123 = vmatpush1.msra.mxu0 %v87
  %124 = vmatprep.subr.mxu0 0.0
  %125 = vmatpush1.msra.mxu0 %v88
  %126 = vmatprep.subr.mxu0 0.0
  %127 = vmatpush1.msra.mxu0 %v89
  %128 = vmatprep.subr.mxu0 0.0
  %129 = vmatpush1.msra.mxu0 %v90
  %130 = vmatprep.subr.mxu0 0.0
  %131 = vmatpush1.msra.mxu0 0.0
  %132 = vmatprep.subr.mxu0 0.0
  %133 = vmatpush1.msra.mxu0 0.0
  %134 = vmatprep.subr.mxu0 0.0
  %135 = vmatpush1.msra.mxu0 0.0
  %136 = vmatprep.subr.mxu0 0.0
  %137 = vmatpush1.msra.mxu0 0.0
  %138 = vmatprep.subr.mxu0 0.0
  %139 = vmatpush1.msra.mxu0 0.0
  %140 = vmatprep.subr.mxu0 0.0
  %141 = vmatpush1.msra.mxu0 0.0
  %142 = vmatprep.subr.mxu0 0.0
  %143 = vmatpush1.msra.mxu0 0.0
  %144 = vmatprep.subr.mxu0 0.0
  %145 = vmatpush1.msra.mxu0 0.0
  %146 = vmatprep.subr.mxu0 0.0
  %147 = vmatpush1.msra.mxu0 0.0
  %148 = vmatprep.subr.mxu0 0.0
  %149 = vmatpush1.msra.mxu0 0.0
  %150 = vmatprep.subr.mxu0 0.0
  %151 = vmatpush1.msra.mxu0 0.0
  %152 = vmatprep.subr.mxu0 0.0
  %153 = vmatpush1.msra.mxu0 0.0
  %154 = vmatprep.subr.mxu0 0.0
  %155 = vmatpush1.msra.mxu0 0.0
  %156 = vmatprep.subr.mxu0 0.0
  %157 = vmatpush1.msra.mxu0 0.0
  %158 = vmatprep.subr.mxu0 0.0
  %159 = vmatpush1.msra.mxu0 0.0
  %160 = vmatprep.subr.mxu0 0.0
  %161 = vmatpush1.msra.mxu0 0.0
  %162 = vmatprep.mubr.f32.mxu0 0.0
  %163 = vmatmul.mubr.f32.gmra.mrb[0].mxu0 %v71
  %v164 = vpop.f32.mrb[0].mxu0
  %v165 = vadd.f32 %v96, %v164
  %v166 = vpop.f32.mrb[0].mxu0
  %167 = vmatprep.mubr.f32.mxu0 0.0
  %168 = vmatmul.mubr.f32.gmra.mrb[0].mxu0 %v72
  %v169 = vpop.f32.mrb[0].mxu0
  %v170 = vadd.f32 %v96, %v169
  %v171 = vpop.f32.mrb[0].mxu0
  %172 = vmatprep.mubr.f32.mxu0 0.0
  %173 = vmatmul.mubr.f32.gmra.mrb[0].mxu0 %v73
  %v174 = vpop.f32.mrb[0].mxu0
  %v175 = vadd.f32 %v96, %v174
  %v176 = vpop.f32.mrb[0].mxu0
  %177 = vmatprep.mubr.f32.mxu0 0.0
  %178 = vmatmul.mubr.f32.gmra.mrb[0].mxu0 %v74
  %v179 = vpop.f32.mrb[0].mxu0
  %v180 = vadd.f32 %v96, %v179
  %v181 = vpop.f32.mrb[0].mxu0
  %182 = vdwg.mxu0
  %vm183 = vcmask 523264
  %184 = vst.msk [vmem:[%s3] sm:$0xff] %vm183, %v165
  %185 = vst.msk [vmem:[%s3 + $0x8] sm:$0xff] %vm183, %v170
  %186 = vst.msk [vmem:[%s3 + $0x10] sm:$0xff] %vm183, %v175
  %187 = vst.msk [vmem:[%s3 + $0x18] sm:$0xff] %vm183, %v180
  // Predicated region
  $region14: #{scale_block_forward.1} parent=0 // pred_check
    _
  $region15: #{scale_block_forward.1} parent=0 // pred_check_branch
    %189 = sbr.rel (0) target = $region17
  $region16: #{scale_block_forward.1} parent=0 // pred_region
    _
  $region17: #{scale_block_forward.1} parent=0 // pred_fallthru
    _
  // Predicated region
  $region18: #{scale_block_forward.1} parent=0 // pred_check
    _
  $region19: #{scale_block_forward.1} parent=0 // pred_check_branch
    %191 = sbr.rel (0) target = $region21
  $region20: #{scale_block_forward.1} parent=0 // pred_region
    _
  $region21: #{scale_block_forward.1} parent=0 // pred_fallthru
    _

</llo_original>
